<compile_context>
chip_gen: v6e
topology: v6e:2x2x1
jax: 0.10.0
libtpu: 0.0.40
codegen_flags: <defaults>
</compile_context>

<pallas_src>
import functools

import jax
import jax.numpy as jnp
from jax.experimental import pallas as pl
from jax.experimental.pallas import tpu as pltpu

# ----- module hyper-parameters (stand-ins for the argparse args) -----
DIM = 2            # args.dim
M = 50             # hidden width m of the PyTorch module
MP = 128           # padded hidden width = one full TPU lane width (do NOT pad to 256)
LEFT = 0.0         # args.left
RIGHT = 1.0        # args.right

MXU_DTYPE = jnp.bfloat16   # matmul-operand dtype (f32 accumulation everywhere)

PARAM_ORDER = ("pad", "w1", "b1", "w2", "b2", "w3", "b3", "w4", "b4",
               "w5", "b5", "w6", "b6", "wo_t", "bo")

# Per-generation defaults: batch tile, scoped-VMEM cap, elementwise dtype, #TCs.
_DEFAULT_CFG = dict(tile_n=2048, vmem_cap=32 << 20, ew=jnp.float32, num_cores=1)


def _detect_config():
    cfg = dict(_DEFAULT_CFG)
    try:
        kind = str(jax.devices()[0].device_kind).lower()
    except Exception:
        kind = ""
    if "v5" in kind:            # 128 MiB VMEM, no bf16 VALU
        cfg.update(tile_n=8192, vmem_cap=100 << 20, ew=jnp.float32, num_cores=1)
    elif "v6" in kind:          # 128 MiB VMEM, bf16 VALU
        cfg.update(tile_n=8192, vmem_cap=100 << 20, ew=jnp.bfloat16, num_cores=1)
    elif "v7" in kind or "7x" in kind:   # 64 MiB VMEM, bf16 VALU, 2 TensorCores
        cfg.update(tile_n=4096, vmem_cap=52 << 20, ew=jnp.bfloat16, num_cores=2)
    return cfg


_CFG = _detect_config()


def resnet_kernel(x_ref, pad_ref,
                  w1_ref, b1_ref, w2_ref, b2_ref, w3_ref, b3_ref,
                  w4_ref, b4_ref, w5_ref, b5_ref, w6_ref, b6_ref,
                  wot_ref, bo_ref, o_ref):
    tile_n = x_ref.shape[0]

    # normalize input to [-1, 1]  (only DIM lanes wide -> trivial VPU work, f32)
    x1 = (x_ref[...] - LEFT) * (2.0 / (RIGHT - LEFT)) - 1.0            # (tile_n, DIM)

    # fc1 (K = DIM = 2: far too shallow to feed the MXU) as rank-1 f32 VPU FMAs.
    y = jnp.broadcast_to(b1_ref[...], (tile_n, MP))
    for d in range(DIM):                                               # unrolled, DIM tiny
        y = y + x1[:, d:d + 1] * w1_ref[d:d + 1, :]
    y = jnp.maximum(y, 0.0)                                            # relu(fc1(x1)), f32

    def dense_relu(act, w_ref, b_ref):
        # bf16 MXU operands, f32 accumulation; bias-add + relu in the elementwise
        # dtype carried by the bias (f32 on v5e, bf16 on v6e/v7x, where the bf16
        # result then feeds the next dot with no extra cast).
        h = jnp.dot(act.astype(w_ref.dtype), w_ref[...],
                    preferred_element_type=jnp.float32)
        return jnp.maximum(h.astype(b_ref.dtype) + b_ref[...], 0.0)

    # residual block 1: fold s = pad(x1, (0, MP-DIM)) straight into the block output
    # with DIM rank-1 FMAs against the precomputed one-hot rows -- no iota/compare/
    # convert passes and no separately materialized s buffer.
    y = dense_relu(y, w2_ref, b2_ref)
    x1e = x1.astype(pad_ref.dtype)
    for d in range(DIM):
        y = y + x1e[:, d:d + 1] * pad_ref[d:d + 1, :]
    s = y
    # residual block 2
    y = dense_relu(dense_relu(y, w3_ref, b3_ref), w4_ref, b4_ref) + s
    s = y
    # residual block 3
    y = dense_relu(dense_relu(y, w5_ref, b5_ref), w6_ref, b6_ref) + s

    # output layer, lane-dense: contract wo_t (1, MP) with y (tile_n, MP) over MP
    # -> a (1, tile_n) row per tile (full-width stores) instead of a (tile_n, 1)
    # single-lane masked column.
    out_row = jax.lax.dot_general(
        wot_ref[...], y.astype(wot_ref.dtype),
        dimension_numbers=(((1,), (1,)), ((), ())),
        preferred_element_type=jnp.float32) + bo_ref[...]
    o_ref[...] = out_row.reshape(o_ref.shape)


def _round_up(a, b):
    return (a + b - 1) // b * b


@functools.partial(jax.jit, static_argnames=("tile_n",))
def resnet_forward(x, kparams, tile_n=None):
    """x: (N, DIM) float32, kparams from prep_params -> (N, 1) float32."""
    n = x.shape[0]
    cfg = _CFG

    tn = int(tile_n) if tile_n is not None else int(cfg["tile_n"])
    tn = min(tn, _round_up(max(n, 1), 8))                  # no huge tile for a tiny batch
    if cfg["num_cores"] > 1:
        # keep >= num_cores grid steps so "parallel" sharding uses both v7x TCs
        tn = min(tn, _round_up(-(-_round_up(n, 8) // cfg["num_cores"]), 8))
    tn = max(8, _round_up(tn, 8))
    g = -(-n // tn)                                        # grid steps
    tn = _round_up(-(-n // g), 8)                          # rebalance: waste < 8 rows/step
    n_pad = g * tn
    if n_pad != n:
        x = jnp.pad(x, ((0, n_pad - n), (0, 0)))           # padded rows sliced off below

    # couple the scoped-VMEM limit to the tile: ~6 f32-sized + ~8 ew-sized (tn, MP)
    # intermediates + lane-padded x double-buffer + weights, with 2x headroom,
    # floored at 16 MiB and capped per generation (physical VMEM minus headroom).
    ew_bytes = jnp.dtype(kparams["b2"].dtype).itemsize
    est = tn * MP * (6 * 4 + 8 * ew_bytes) + 2 * tn * MP * 4 + (1 << 20)
    vmem_limit = int(min(cfg["vmem_cap"], max(16 << 20, 2 * est)))

    flops = n_pad * (2 * DIM * MP + 10 * MP * MP + 2 * MP)
    bytes_accessed = (n_pad * (DIM + 1) * 4
                      + 5 * MP * MP * jnp.dtype(MXU_DTYPE).itemsize + 8 * MP * 4)

    inputs = [x] + [kparams[k] for k in PARAM_ORDER]
    in_specs = [pl.BlockSpec((tn, DIM), lambda i: (i, 0))]
    # weights/biases: constant block index -> fetched once, stay VMEM-resident.
    in_specs += [pl.BlockSpec(kparams[k].shape, lambda i: (0, 0)) for k in PARAM_ORDER]

    out = pl.pallas_call(
        resnet_kernel,
        out_shape=jax.ShapeDtypeStruct((g, 1, tn), jnp.float32),
        grid=(g,),
        in_specs=in_specs,
        out_specs=pl.BlockSpec((1, 1, tn), lambda i: (i, 0, 0)),
        compiler_params=pltpu.CompilerParams(
            dimension_semantics=("parallel",),
            vmem_limit_bytes=vmem_limit,
        ),
        cost_estimate=pl.CostEstimate(
            flops=flops, transcendentals=0, bytes_accessed=bytes_accessed),
    )(*inputs)

    # (g, 1, tn) flattens in batch order; drop padded rows and restore (N, 1).
    return out.reshape(n_pad, 1)[:n]


def init_params(key):
    """Matches the torch init: weight ~ N(0, 0.1), bias = 0.
    Torch Linear weight is (out, in); we keep the transposed (in, out) layout."""
    params = {}
    keys = jax.random.split(key, 7)
    shapes = [(DIM, M)] + [(M, M)] * 5                     # fc1 .. fc6 as (in, out)
    for i, shp in enumerate(shapes, start=1):
        params[f"w{i}"] = 0.1 * jax.random.normal(keys[i - 1], shp, jnp.float32)
        params[f"b{i}"] = jnp.zeros((shp[1],), jnp.float32)
    params["wo"] = 0.1 * jax.random.normal(keys[6], (M, 1), jnp.float32)
    params["bo"] = jnp.zeros((1,), jnp.float32)
    return params


def prep_params(params, ew_dtype=None, mxu_dtype=MXU_DTYPE):
    """Pad hidden width M -> MP = 128 once at setup and cast to the kernel dtypes.
    Padded rows/cols are zero, so the extra lanes stay exactly zero through the net.
    ew_dtype = elementwise dtype for bias/relu/residual math (defaults to the detected
    per-generation choice: bf16 on v6e/v7x, f32 on v5e/unknown)."""
    if ew_dtype is None:
        ew_dtype = _CFG["ew"]
    kp = {}
    kp["pad"] = jnp.eye(DIM, MP, dtype=jnp.float32).astype(ew_dtype)     # one-hot rows for s = pad(x1)
    kp["w1"] = jnp.pad(params["w1"], ((0, 0), (0, MP - M)))              # (DIM, MP) f32 (VPU rank-1 path)
    kp["b1"] = jnp.pad(params["b1"], (0, MP - M)).reshape(1, MP)         # f32
    for i in range(2, 7):
        kp[f"w{i}"] = jnp.pad(params[f"w{i}"],
                              ((0, MP - M), (0, MP - M))).astype(mxu_dtype)      # (MP, MP)
        kp[f"b{i}"] = jnp.pad(params[f"b{i}"], (0, MP - M)).reshape(1, MP).astype(ew_dtype)
    kp["wo_t"] = jnp.pad(params["wo"].T, ((0, 0), (0, MP - M))).astype(mxu_dtype)  # (1, MP)
    kp["bo"] = params["bo"].reshape(1, 1)                                 # f32
    return kp


def resnet_reference(x, params, mxu_dtype=jnp.float32, ew_dtype=jnp.float32):
    """Pure-JAX mirror of the PyTorch forward. mxu_dtype / ew_dtype let it mimic the
    kernel's matmul-operand / elementwise dtypes for tight comparisons; with the
    defaults (f32, f32) it is the exact PyTorch-equivalent forward."""
    x1 = (x - LEFT) * 2.0 / (RIGHT - LEFT) - 1.0

    def dense_relu(h, w, b):
        o = jnp.dot(h.astype(mxu_dtype), w.astype(mxu_dtype),
                    preferred_element_type=jnp.float32)
        return jax.nn.relu(o.astype(ew_dtype) + b.astype(ew_dtype))

    y = jax.nn.relu(x1 @ params["w1"] + params["b1"])        # fc1 stays f32 (kernel: VPU rank-1)
    s = jnp.pad(x1.astype(ew_dtype), ((0, 0), (0, M - DIM)))
    y = dense_relu(y, params["w2"], params["b2"]) + s
    s = y
    y = dense_relu(dense_relu(y, params["w3"], params["b3"]),
                   params["w4"], params["b4"]) + s
    s = y
    y = dense_relu(dense_relu(y, params["w5"], params["b5"]),
                   params["w6"], params["b6"]) + s
    out = jnp.dot(y.astype(mxu_dtype), params["wo"].astype(mxu_dtype),
                  preferred_element_type=jnp.float32) + params["bo"]
    return out.astype(jnp.float32)


if __name__ == "__main__":
    key = jax.random.PRNGKey(0)
    kx1, kx2, kp_key = jax.random.split(key, 3)
    params = init_params(kp_key)

    # --- path 1: f32 elementwise (v5e-style), single small tile ---
    kp_f32 = prep_params(params, ew_dtype=jnp.float32)
    n1 = 8
    x1 = jax.random.uniform(kx1, (n1, DIM), jnp.float32, minval=LEFT, maxval=RIGHT)
    out1 = jax.block_until_ready(resnet_forward(x1, kp_f32, tile_n=64))
    ref1 = resnet_reference(x1, params, mxu_dtype=MXU_DTYPE, ew_dtype=jnp.float32)
    assert out1.shape == (n1, 1)
    assert jnp.allclose(out1, ref1, atol=2e-3, rtol=2e-3), \
        float(jnp.max(jnp.abs(out1 - ref1)))
    # loose sanity check against the full-f32 PyTorch-equivalent forward
    assert jnp.allclose(out1, resnet_reference(x1, params), atol=1e-1, rtol=1e-1)

    # --- path 2: bf16 elementwise (v6e/v7x-style), multi-tile grid + remainder padding ---
    kp_bf16 = prep_params(params, ew_dtype=jnp.bfloat16)
    n2 = 200
    x2 = jax.random.uniform(kx2, (n2, DIM), jnp.float32, minval=LEFT, maxval=RIGHT)
    out2 = jax.block_until_ready(resnet_forward(x2, kp_bf16, tile_n=64))
    ref2 = resnet_reference(x2, params, mxu_dtype=MXU_DTYPE, ew_dtype=jnp.bfloat16)
    assert out2.shape == (n2, 1)
    assert jnp.allclose(out2, ref2, atol=1e-2, rtol=1e-2), \
        float(jnp.max(jnp.abs(out2 - ref2)))

    # --- path 3: auto (chip-detected) tile / vmem / elementwise-dtype config ---
    kp_auto = prep_params(params)
    out3 = jax.block_until_ready(resnet_forward(x2, kp_auto))
    ref3 = resnet_reference(x2, params, mxu_dtype=MXU_DTYPE,
                            ew_dtype=kp_auto["b2"].dtype)
    assert out3.shape == (n2, 1)
    assert jnp.allclose(out3, ref3, atol=1e-2, rtol=1e-2), \
        float(jnp.max(jnp.abs(out3 - ref3)))

    print("KERNEL_OK")
</pallas_src>

<mosaic_0001>
module attributes {stable_mosaic.version = 11 : i64} {
  func.func @resnet_kernel(%arg0: i32, %arg1: memref<8x2xf32, #tpu.memory_space<vmem>>, %arg2: memref<2x128xf32, #tpu.memory_space<vmem>>, %arg3: memref<2x128xf32, #tpu.memory_space<vmem>>, %arg4: memref<1x128xf32, #tpu.memory_space<vmem>>, %arg5: memref<128x128xbf16, #tpu.memory_space<vmem>>, %arg6: memref<1x128xf32, #tpu.memory_space<vmem>>, %arg7: memref<128x128xbf16, #tpu.memory_space<vmem>>, %arg8: memref<1x128xf32, #tpu.memory_space<vmem>>, %arg9: memref<128x128xbf16, #tpu.memory_space<vmem>>, %arg10: memref<1x128xf32, #tpu.memory_space<vmem>>, %arg11: memref<128x128xbf16, #tpu.memory_space<vmem>>, %arg12: memref<1x128xf32, #tpu.memory_space<vmem>>, %arg13: memref<128x128xbf16, #tpu.memory_space<vmem>>, %arg14: memref<1x128xf32, #tpu.memory_space<vmem>>, %arg15: memref<1x128xbf16, #tpu.memory_space<vmem>>, %arg16: memref<1x1xf32, #tpu.memory_space<vmem>>, %arg17: memref<1x1x8xf32, #tpu.memory_space<vmem>>) attributes {dimension_semantics = [#tpu.dimension_semantics<parallel>], iteration_bounds = array<i64: 1>, scalar_prefetch = 0 : i64, scratch_operands = 0 : i64, tpu.core_type = #tpu.core_type<tc>, window_params = [{transform_indices = @transform_0, window_bounds = array<i64: 8, 2>}, {pipeline_mode = #tpu.pipeline_mode<synchronous>, transform_indices = @transform_1, window_bounds = array<i64: 2, 128>}, {pipeline_mode = #tpu.pipeline_mode<synchronous>, transform_indices = @transform_2, window_bounds = array<i64: 2, 128>}, {pipeline_mode = #tpu.pipeline_mode<synchronous>, transform_indices = @transform_3, window_bounds = array<i64: 1, 128>}, {pipeline_mode = #tpu.pipeline_mode<synchronous>, transform_indices = @transform_4, window_bounds = array<i64: 128, 128>}, {pipeline_mode = #tpu.pipeline_mode<synchronous>, transform_indices = @transform_5, window_bounds = array<i64: 1, 128>}, {pipeline_mode = #tpu.pipeline_mode<synchronous>, transform_indices = @transform_6, window_bounds = array<i64: 128, 128>}, {pipeline_mode = #tpu.pipeline_mode<synchronous>, transform_indices = @transform_7, window_bounds = array<i64: 1, 128>}, {pipeline_mode = #tpu.pipeline_mode<synchronous>, transform_indices = @transform_8, window_bounds = array<i64: 128, 128>}, {pipeline_mode = #tpu.pipeline_mode<synchronous>, transform_indices = @transform_9, window_bounds = array<i64: 1, 128>}, {pipeline_mode = #tpu.pipeline_mode<synchronous>, transform_indices = @transform_10, window_bounds = array<i64: 128, 128>}, {pipeline_mode = #tpu.pipeline_mode<synchronous>, transform_indices = @transform_11, window_bounds = array<i64: 1, 128>}, {pipeline_mode = #tpu.pipeline_mode<synchronous>, transform_indices = @transform_12, window_bounds = array<i64: 128, 128>}, {pipeline_mode = #tpu.pipeline_mode<synchronous>, transform_indices = @transform_13, window_bounds = array<i64: 1, 128>}, {pipeline_mode = #tpu.pipeline_mode<synchronous>, transform_indices = @transform_14, window_bounds = array<i64: 1, 128>}, {pipeline_mode = #tpu.pipeline_mode<synchronous>, transform_indices = @transform_15, window_bounds = array<i64: 1, 1>}, {transform_indices = @transform_16, window_bounds = array<i64: 1, 1, 8>}]} {
    %c0 = arith.constant 0 : index
    %c0_0 = arith.constant 0 : index
    %0 = vector.load %arg1[%c0, %c0_0] : memref<8x2xf32, #tpu.memory_space<vmem>>, vector<8x2xf32>
    %cst = arith.constant 0.000000e+00 : f32
    %1 = vector.broadcast %cst : f32 to vector<8x2xf32>
    %2 = arith.subf %0, %1 : vector<8x2xf32>
    %cst_1 = arith.constant 2.000000e+00 : f32
    %3 = vector.broadcast %cst_1 : f32 to vector<8x2xf32>
    %4 = arith.mulf %2, %3 : vector<8x2xf32>
    %cst_2 = arith.constant 1.000000e+00 : f32
    %5 = vector.broadcast %cst_2 : f32 to vector<8x2xf32>
    %6 = arith.subf %4, %5 : vector<8x2xf32>
    %c0_3 = arith.constant 0 : index
    %c0_4 = arith.constant 0 : index
    %7 = vector.load %arg4[%c0_3, %c0_4] : memref<1x128xf32, #tpu.memory_space<vmem>>, vector<1x128xf32>
    %8 = vector.shape_cast %7 : vector<1x128xf32> to vector<1x128xf32>
    %9 = vector.broadcast %8 : vector<1x128xf32> to vector<8x128xf32>
    %10 = vector.extract_strided_slice %6 {offsets = [0, 0], sizes = [8, 1], strides = [1, 1]} : vector<8x2xf32> to vector<8x1xf32>
    %c0_5 = arith.constant 0 : index
    %c0_6 = arith.constant 0 : index
    %11 = vector.load %arg3[%c0_5, %c0_6] : memref<2x128xf32, #tpu.memory_space<vmem>>, vector<1x128xf32>
    %12 = vector.broadcast %10 : vector<8x1xf32> to vector<8x128xf32>
    %13 = vector.broadcast %11 : vector<1x128xf32> to vector<8x128xf32>
    %14 = arith.mulf %12, %13 : vector<8x128xf32>
    %15 = arith.addf %9, %14 : vector<8x128xf32>
    %16 = vector.extract_strided_slice %6 {offsets = [0, 1], sizes = [8, 1], strides = [1, 1]} : vector<8x2xf32> to vector<8x1xf32>
    %c1 = arith.constant 1 : index
    %c0_7 = arith.constant 0 : index
    %17 = vector.load %arg3[%c1, %c0_7] : memref<2x128xf32, #tpu.memory_space<vmem>>, vector<1x128xf32>
    %18 = vector.broadcast %16 : vector<8x1xf32> to vector<8x128xf32>
    %19 = vector.broadcast %17 : vector<1x128xf32> to vector<8x128xf32>
    %20 = arith.mulf %18, %19 : vector<8x128xf32>
    %21 = arith.addf %15, %20 : vector<8x128xf32>
    %cst_8 = arith.constant 0.000000e+00 : f32
    %22 = vector.broadcast %cst_8 : f32 to vector<8x128xf32>
    %23 = arith.maximumf %21, %22 : vector<8x128xf32>
    %24 = arith.truncf %23 : vector<8x128xf32> to vector<8x128xbf16>
    %c0_9 = arith.constant 0 : index
    %c0_10 = arith.constant 0 : index
    %25 = vector.load %arg5[%c0_9, %c0_10] : memref<128x128xbf16, #tpu.memory_space<vmem>>, vector<128x128xbf16>
    %cst_11 = arith.constant dense<0.000000e+00> : vector<8x128xf32>
    %26 = tpu.matmul %24, %25, %cst_11 {dimension_numbers = #tpu.dot_dimension_numbers<[1], [0], [0], [1], [0, 0, 1, 1], [], []>} : vector<8x128xbf16>, vector<128x128xbf16>, vector<8x128xf32> -> vector<8x128xf32>
    %c0_12 = arith.constant 0 : index
    %c0_13 = arith.constant 0 : index
    %27 = vector.load %arg6[%c0_12, %c0_13] : memref<1x128xf32, #tpu.memory_space<vmem>>, vector<1x128xf32>
    %28 = vector.broadcast %27 : vector<1x128xf32> to vector<8x128xf32>
    %29 = arith.addf %26, %28 : vector<8x128xf32>
    %cst_14 = arith.constant 0.000000e+00 : f32
    %30 = vector.broadcast %cst_14 : f32 to vector<8x128xf32>
    %31 = arith.maximumf %29, %30 : vector<8x128xf32>
    %32 = vector.extract_strided_slice %6 {offsets = [0, 0], sizes = [8, 1], strides = [1, 1]} : vector<8x2xf32> to vector<8x1xf32>
    %c0_15 = arith.constant 0 : index
    %c0_16 = arith.constant 0 : index
    %33 = vector.load %arg2[%c0_15, %c0_16] : memref<2x128xf32, #tpu.memory_space<vmem>>, vector<1x128xf32>
    %34 = vector.broadcast %32 : vector<8x1xf32> to vector<8x128xf32>
    %35 = vector.broadcast %33 : vector<1x128xf32> to vector<8x128xf32>
    %36 = arith.mulf %34, %35 : vector<8x128xf32>
    %37 = arith.addf %31, %36 : vector<8x128xf32>
    %38 = vector.extract_strided_slice %6 {offsets = [0, 1], sizes = [8, 1], strides = [1, 1]} : vector<8x2xf32> to vector<8x1xf32>
    %c1_17 = arith.constant 1 : index
    %c0_18 = arith.constant 0 : index
    %39 = vector.load %arg2[%c1_17, %c0_18] : memref<2x128xf32, #tpu.memory_space<vmem>>, vector<1x128xf32>
    %40 = vector.broadcast %38 : vector<8x1xf32> to vector<8x128xf32>
    %41 = vector.broadcast %39 : vector<1x128xf32> to vector<8x128xf32>
    %42 = arith.mulf %40, %41 : vector<8x128xf32>
    %43 = arith.addf %37, %42 : vector<8x128xf32>
    %44 = arith.truncf %43 : vector<8x128xf32> to vector<8x128xbf16>
    %c0_19 = arith.constant 0 : index
    %c0_20 = arith.constant 0 : index
    %45 = vector.load %arg7[%c0_19, %c0_20] : memref<128x128xbf16, #tpu.memory_space<vmem>>, vector<128x128xbf16>
    %cst_21 = arith.constant dense<0.000000e+00> : vector<8x128xf32>
    %46 = tpu.matmul %44, %45, %cst_21 {dimension_numbers = #tpu.dot_dimension_numbers<[1], [0], [0], [1], [0, 0, 1, 1], [], []>} : vector<8x128xbf16>, vector<128x128xbf16>, vector<8x128xf32> -> vector<8x128xf32>
    %c0_22 = arith.constant 0 : index
    %c0_23 = arith.constant 0 : index
    %47 = vector.load %arg8[%c0_22, %c0_23] : memref<1x128xf32, #tpu.memory_space<vmem>>, vector<1x128xf32>
    %48 = vector.broadcast %47 : vector<1x128xf32> to vector<8x128xf32>
    %49 = arith.addf %46, %48 : vector<8x128xf32>
    %cst_24 = arith.constant 0.000000e+00 : f32
    %50 = vector.broadcast %cst_24 : f32 to vector<8x128xf32>
    %51 = arith.maximumf %49, %50 : vector<8x128xf32>
    %52 = arith.truncf %51 : vector<8x128xf32> to vector<8x128xbf16>
    %c0_25 = arith.constant 0 : index
    %c0_26 = arith.constant 0 : index
    %53 = vector.load %arg9[%c0_25, %c0_26] : memref<128x128xbf16, #tpu.memory_space<vmem>>, vector<128x128xbf16>
    %cst_27 = arith.constant dense<0.000000e+00> : vector<8x128xf32>
    %54 = tpu.matmul %52, %53, %cst_27 {dimension_numbers = #tpu.dot_dimension_numbers<[1], [0], [0], [1], [0, 0, 1, 1], [], []>} : vector<8x128xbf16>, vector<128x128xbf16>, vector<8x128xf32> -> vector<8x128xf32>
    %c0_28 = arith.constant 0 : index
    %c0_29 = arith.constant 0 : index
    %55 = vector.load %arg10[%c0_28, %c0_29] : memref<1x128xf32, #tpu.memory_space<vmem>>, vector<1x128xf32>
    %56 = vector.broadcast %55 : vector<1x128xf32> to vector<8x128xf32>
    %57 = arith.addf %54, %56 : vector<8x128xf32>
    %cst_30 = arith.constant 0.000000e+00 : f32
    %58 = vector.broadcast %cst_30 : f32 to vector<8x128xf32>
    %59 = arith.maximumf %57, %58 : vector<8x128xf32>
    %60 = arith.addf %59, %43 : vector<8x128xf32>
    %61 = arith.truncf %60 : vector<8x128xf32> to vector<8x128xbf16>
    %c0_31 = arith.constant 0 : index
    %c0_32 = arith.constant 0 : index
    %62 = vector.load %arg11[%c0_31, %c0_32] : memref<128x128xbf16, #tpu.memory_space<vmem>>, vector<128x128xbf16>
    %cst_33 = arith.constant dense<0.000000e+00> : vector<8x128xf32>
    %63 = tpu.matmul %61, %62, %cst_33 {dimension_numbers = #tpu.dot_dimension_numbers<[1], [0], [0], [1], [0, 0, 1, 1], [], []>} : vector<8x128xbf16>, vector<128x128xbf16>, vector<8x128xf32> -> vector<8x128xf32>
    %c0_34 = arith.constant 0 : index
    %c0_35 = arith.constant 0 : index
    %64 = vector.load %arg12[%c0_34, %c0_35] : memref<1x128xf32, #tpu.memory_space<vmem>>, vector<1x128xf32>
    %65 = vector.broadcast %64 : vector<1x128xf32> to vector<8x128xf32>
    %66 = arith.addf %63, %65 : vector<8x128xf32>
    %cst_36 = arith.constant 0.000000e+00 : f32
    %67 = vector.broadcast %cst_36 : f32 to vector<8x128xf32>
    %68 = arith.maximumf %66, %67 : vector<8x128xf32>
    %69 = arith.truncf %68 : vector<8x128xf32> to vector<8x128xbf16>
    %c0_37 = arith.constant 0 : index
    %c0_38 = arith.constant 0 : index
    %70 = vector.load %arg13[%c0_37, %c0_38] : memref<128x128xbf16, #tpu.memory_space<vmem>>, vector<128x128xbf16>
    %cst_39 = arith.constant dense<0.000000e+00> : vector<8x128xf32>
    %71 = tpu.matmul %69, %70, %cst_39 {dimension_numbers = #tpu.dot_dimension_numbers<[1], [0], [0], [1], [0, 0, 1, 1], [], []>} : vector<8x128xbf16>, vector<128x128xbf16>, vector<8x128xf32> -> vector<8x128xf32>
    %c0_40 = arith.constant 0 : index
    %c0_41 = arith.constant 0 : index
    %72 = vector.load %arg14[%c0_40, %c0_41] : memref<1x128xf32, #tpu.memory_space<vmem>>, vector<1x128xf32>
    %73 = vector.broadcast %72 : vector<1x128xf32> to vector<8x128xf32>
    %74 = arith.addf %71, %73 : vector<8x128xf32>
    %cst_42 = arith.constant 0.000000e+00 : f32
    %75 = vector.broadcast %cst_42 : f32 to vector<8x128xf32>
    %76 = arith.maximumf %74, %75 : vector<8x128xf32>
    %77 = arith.addf %76, %60 : vector<8x128xf32>
    %c0_43 = arith.constant 0 : index
    %c0_44 = arith.constant 0 : index
    %78 = vector.load %arg15[%c0_43, %c0_44] : memref<1x128xbf16, #tpu.memory_space<vmem>>, vector<1x128xbf16>
    %79 = arith.truncf %77 : vector<8x128xf32> to vector<8x128xbf16>
    %cst_45 = arith.constant dense<0.000000e+00> : vector<1x8xf32>
    %80 = tpu.matmul %78, %79, %cst_45 {dimension_numbers = #tpu.dot_dimension_numbers<[1], [1], [0], [0], [0, 0, 1, 0], [], []>} : vector<1x128xbf16>, vector<8x128xbf16>, vector<1x8xf32> -> vector<1x8xf32>
    %c0_46 = arith.constant 0 : index
    %c0_47 = arith.constant 0 : index
    %81 = vector.load %arg16[%c0_46, %c0_47] : memref<1x1xf32, #tpu.memory_space<vmem>>, vector<1x1xf32>
    %82 = vector.broadcast %81 : vector<1x1xf32> to vector<1x8xf32>
    %83 = arith.addf %80, %82 : vector<1x8xf32>
    %84 = vector.shape_cast %83 : vector<1x8xf32> to vector<1x1x8xf32>
    %c0_48 = arith.constant 0 : index
    %c0_49 = arith.constant 0 : index
    %c0_50 = arith.constant 0 : index
    %85 = vector.load %arg17[%c0_48, %c0_49, %c0_50] : memref<1x1x8xf32, #tpu.memory_space<vmem>>, vector<1x1x8xf32>
    tpu.vector_store %arg17[%c0_48, %c0_49, %c0_50], %84 {strides = array<i32>} : memref<1x1x8xf32, #tpu.memory_space<vmem>>, vector<1x1x8xf32>,
    return
  }
  func.func @transform_0(%arg0: i32) -> (i32, i32) {
    %c0_i32 = arith.constant 0 : i32
    %c0_i32_0 = arith.constant 0 : i32
    return %arg0, %c0_i32 : i32, i32
  }
  func.func @transform_1(%arg0: i32) -> (i32, i32) {
    %c0_i32 = arith.constant 0 : i32
    %c0_i32_0 = arith.constant 0 : i32
    %c0_i32_1 = arith.constant 0 : i32
    return %c0_i32, %c0_i32_0 : i32, i32
  }
  func.func @transform_2(%arg0: i32) -> (i32, i32) {
    %c0_i32 = arith.constant 0 : i32
    %c0_i32_0 = arith.constant 0 : i32
    %c0_i32_1 = arith.constant 0 : i32
    return %c0_i32, %c0_i32_0 : i32, i32
  }
  func.func @transform_3(%arg0: i32) -> (i32, i32) {
    %c0_i32 = arith.constant 0 : i32
    %c0_i32_0 = arith.constant 0 : i32
    %c0_i32_1 = arith.constant 0 : i32
    return %c0_i32, %c0_i32_0 : i32, i32
  }
  func.func @transform_4(%arg0: i32) -> (i32, i32) {
    %c0_i32 = arith.constant 0 : i32
    %c0_i32_0 = arith.constant 0 : i32
    %c0_i32_1 = arith.constant 0 : i32
    return %c0_i32, %c0_i32_0 : i32, i32
  }
  func.func @transform_5(%arg0: i32) -> (i32, i32) {
    %c0_i32 = arith.constant 0 : i32
    %c0_i32_0 = arith.constant 0 : i32
    %c0_i32_1 = arith.constant 0 : i32
    return %c0_i32, %c0_i32_0 : i32, i32
  }
  func.func @transform_6(%arg0: i32) -> (i32, i32) {
    %c0_i32 = arith.constant 0 : i32
    %c0_i32_0 = arith.constant 0 : i32
    %c0_i32_1 = arith.constant 0 : i32
    return %c0_i32, %c0_i32_0 : i32, i32
  }
  func.func @transform_7(%arg0: i32) -> (i32, i32) {
    %c0_i32 = arith.constant 0 : i32
    %c0_i32_0 = arith.constant 0 : i32
    %c0_i32_1 = arith.constant 0 : i32
    return %c0_i32, %c0_i32_0 : i32, i32
  }
  func.func @transform_8(%arg0: i32) -> (i32, i32) {
    %c0_i32 = arith.constant 0 : i32
    %c0_i32_0 = arith.constant 0 : i32
    %c0_i32_1 = arith.constant 0 : i32
    return %c0_i32, %c0_i32_0 : i32, i32
  }
  func.func @transform_9(%arg0: i32) -> (i32, i32) {
    %c0_i32 = arith.constant 0 : i32
    %c0_i32_0 = arith.constant 0 : i32
    %c0_i32_1 = arith.constant 0 : i32
    return %c0_i32, %c0_i32_0 : i32, i32
  }
  func.func @transform_10(%arg0: i32) -> (i32, i32) {
    %c0_i32 = arith.constant 0 : i32
    %c0_i32_0 = arith.constant 0 : i32
    %c0_i32_1 = arith.constant 0 : i32
    return %c0_i32, %c0_i32_0 : i32, i32
  }
  func.func @transform_11(%arg0: i32) -> (i32, i32) {
    %c0_i32 = arith.constant 0 : i32
    %c0_i32_0 = arith.constant 0 : i32
    %c0_i32_1 = arith.constant 0 : i32
    return %c0_i32, %c0_i32_0 : i32, i32
  }
  func.func @transform_12(%arg0: i32) -> (i32, i32) {
    %c0_i32 = arith.constant 0 : i32
    %c0_i32_0 = arith.constant 0 : i32
    %c0_i32_1 = arith.constant 0 : i32
    return %c0_i32, %c0_i32_0 : i32, i32
  }
  func.func @transform_13(%arg0: i32) -> (i32, i32) {
    %c0_i32 = arith.constant 0 : i32
    %c0_i32_0 = arith.constant 0 : i32
    %c0_i32_1 = arith.constant 0 : i32
    return %c0_i32, %c0_i32_0 : i32, i32
  }
  func.func @transform_14(%arg0: i32) -> (i32, i32) {
    %c0_i32 = arith.constant 0 : i32
    %c0_i32_0 = arith.constant 0 : i32
    %c0_i32_1 = arith.constant 0 : i32
    return %c0_i32, %c0_i32_0 : i32, i32
  }
  func.func @transform_15(%arg0: i32) -> (i32, i32) {
    %c0_i32 = arith.constant 0 : i32
    %c0_i32_0 = arith.constant 0 : i32
    %c0_i32_1 = arith.constant 0 : i32
    return %c0_i32, %c0_i32_0 : i32, i32
  }
  func.func @transform_16(%arg0: i32) -> (i32, i32, i32) {
    %c0_i32 = arith.constant 0 : i32
    %c0_i32_0 = arith.constant 0 : i32
    %c0_i32_1 = arith.constant 0 : i32
    return %arg0, %c0_i32, %c0_i32_0 : i32, i32, i32
  }
}

</mosaic_0001>

<llo_original>
// kernel: resnet_forward.1
$region0: #{resnet_forward.1}
  #allocation0 [shape = 'u32[]', space=smem, size = 0x4, offset = 0x4, fixed_abs, tag = 'smem constant byte address 0x4 - core index']
  #allocation1 [shape = 'u32[144,128]{1,0:T(1,128)}', space=vmem, size = 0x12000, scoped, tag = 'internal scratch']
  #allocation2 [shape = 'f32[1,1]{1,0:T(1,128)S(1)}', space=vmem, size = 0x200, scoped, tag = 'scoped memory for resnet_forward.1']
  %s0 = inlined_call_operand.vmem [shape: f32[8,2], index: 0, kind: input, shape index: {}]
  %s1 = inlined_call_operand.vmem [shape: f32[2,128], index: 1, kind: input, shape index: {}]
  %s2 = inlined_call_operand.vmem [shape: f32[2,128], index: 2, kind: input, shape index: {}]
  %s3 = inlined_call_operand.vmem [shape: f32[1,128], index: 3, kind: input, shape index: {}]
  %s4 = inlined_call_operand.hbm [shape: bf16[128,128], index: 4, kind: input, shape index: {}]
  %s5 = inlined_call_operand.vmem [shape: f32[1,128], index: 5, kind: input, shape index: {}]
  %s6 = inlined_call_operand.hbm [shape: bf16[128,128], index: 6, kind: input, shape index: {}]
  %s7 = inlined_call_operand.vmem [shape: f32[1,128], index: 7, kind: input, shape index: {}]
  %s8 = inlined_call_operand.hbm [shape: bf16[128,128], index: 8, kind: input, shape index: {}]
  %s9 = inlined_call_operand.vmem [shape: f32[1,128], index: 9, kind: input, shape index: {}]
  %s10 = inlined_call_operand.hbm [shape: bf16[128,128], index: 10, kind: input, shape index: {}]
  %s11 = inlined_call_operand.vmem [shape: f32[1,128], index: 11, kind: input, shape index: {}]
  %s12 = inlined_call_operand.hbm [shape: bf16[128,128], index: 12, kind: input, shape index: {}]
  %s13 = inlined_call_operand.vmem [shape: f32[1,128], index: 13, kind: input, shape index: {}]
  %s14 = inlined_call_operand.vmem [shape: bf16[1,128], index: 14, kind: input, shape index: {}]
  %s15 = inlined_call_operand.<no memory space> [shape: f32[1,1], index: 15, kind: input, shape index: {}]
  %s16 = inlined_call_operand.hbm [shape: f32[1,1,8], index: 16, kind: output, shape index: {}]
  %s17 = sld [smem:[#allocation0]]
  $region94: #{resnet_forward.1} parent=0
    _
  %s19 = ssub.s32 1, %s17
  %s20 = scalar_select 0, %s19, %s17
  %v21 = vstv %s15
  %22 = vst [vmem:[#allocation2] sm:$0x1] %v21
  $region1: #{resnet_forward.1} parent=0
    #allocation3 [shape = 'u8[32768]{0}', space=vmem, size = 0x8000, scoped, tag = 'input window, operand 4, single buffered']
    #allocation4 [shape = 's32[1]{0}', space=sflag, size = 0x4, scoped, tag = 'scoped memory for resnet_forward.1']
    #allocation5 [shape = 's32[1]{0}', space=sflag, size = 0x4, scoped, tag = 'scoped memory for resnet_forward.1']
    #allocation6 [shape = 'u8[32768]{0}', space=vmem, size = 0x8000, scoped, tag = 'input window, operand 6, single buffered']
    #allocation7 [shape = 's32[1]{0}', space=sflag, size = 0x4, scoped, tag = 'scoped memory for resnet_forward.1']
    #allocation8 [shape = 'u8[32768]{0}', space=vmem, size = 0x8000, scoped, tag = 'input window, operand 8, single buffered']
    #allocation9 [shape = 'u8[32768]{0}', space=vmem, size = 0x8000, scoped, tag = 'input window, operand 10, single buffered']
    #allocation10 [shape = 's32[1]{0}', space=sflag, size = 0x4, scoped, tag = 'scoped memory for resnet_forward.1']
    #allocation11 [shape = 'u8[32768]{0}', space=vmem, size = 0x8000, scoped, tag = 'input window, operand 12, single buffered']
    #allocation12 [shape = 'u8[512]{0}', space=vmem, size = 0x400, scoped, tag = 'output window, operand 0, single buffered']
    %23 = vsyncpa [#allocation4], 0
    %24 = vsyncpa [#allocation7], 0
    %25 = vsyncpa [#allocation10], 0
    %26 = vsyncpa [#allocation5], 0
    // Predicated region
    $region2: #{resnet_forward.1} parent=1 // pred_check
      _
    $region3: #{resnet_forward.1} parent=1 // pred_check_branch
      %28 = sbr.rel (0) target = $region5
    $region4: #{resnet_forward.1} parent=1 // pred_region
      _
    $region5: #{resnet_forward.1} parent=1 // pred_fallthru
      _
    // Predicated region
    $region6: #{resnet_forward.1} parent=1 // pred_check
      _
    $region7: #{resnet_forward.1} parent=1 // pred_check_branch
      %30 = sbr.rel (0) target = $region9
    $region8: #{resnet_forward.1} parent=1 // pred_region
      _
    $region9: #{resnet_forward.1} parent=1 // pred_fallthru
      _
    // Predicated region
    $region10: #{resnet_forward.1} parent=1 // pred_check
      _
    $region11: #{resnet_forward.1} parent=1 // pred_check_branch
      %32 = sbr.rel (0) target = $region13
    $region12: #{resnet_forward.1} parent=1 // pred_region
      _
    $region13: #{resnet_forward.1} parent=1 // pred_fallthru
      _
    // Predicated region
    $region14: #{resnet_forward.1} parent=1 // pred_check
      _
    $region15: #{resnet_forward.1} parent=1 // pred_check_branch
      %34 = sbr.rel (0) target = $region17
    $region16: #{resnet_forward.1} parent=1 // pred_region
      _
    $region17: #{resnet_forward.1} parent=1 // pred_fallthru
      _
    // Predicated region
    $region18: #{resnet_forward.1} parent=1 // pred_check
      _
    $region19: #{resnet_forward.1} parent=1 // pred_check_branch
      %36 = sbr.rel (0) target = $region21
    $region20: #{resnet_forward.1} parent=1 // pred_region
      %s38 = ssub.s32 1024, 1024
      %39 = vsyncadd [#allocation4], %s38
      %s40 = sshll.u32 [#allocation3], 4
      %s41 = int_to_ptr.vmem [resolvable:$true] %s40
      %46 = dma.hbm_to_vmem [thread:$0]  %s4, 1024, %s41, [#allocation4], 64, 64, 4
    $region21: #{resnet_forward.1} parent=1 // pred_fallthru
      _
    // Predicated region
    $region22: #{resnet_forward.1} parent=1 // pred_check
      _
    $region23: #{resnet_forward.1} parent=1 // pred_check_branch
      %48 = sbr.rel (0) target = $region25
    $region24: #{resnet_forward.1} parent=1 // pred_region
      _
    $region25: #{resnet_forward.1} parent=1 // pred_fallthru
      _
    // Predicated region
    $region26: #{resnet_forward.1} parent=1 // pred_check
      _
    $region27: #{resnet_forward.1} parent=1 // pred_check_branch
      %50 = sbr.rel (0) target = $region29
    $region28: #{resnet_forward.1} parent=1 // pred_region
      %s52 = ssub.s32 1024, 1024
      %53 = vsyncadd [#allocation7], %s52
      %s54 = sshll.u32 [#allocation6], 4
      %s55 = int_to_ptr.vmem [resolvable:$true] %s54
      %60 = dma.hbm_to_vmem [thread:$0]  %s6, 1024, %s55, [#allocation7], 64, 64, 4
    $region29: #{resnet_forward.1} parent=1 // pred_fallthru
      _
    // Predicated region
    $region30: #{resnet_forward.1} parent=1 // pred_check
      _
    $region31: #{resnet_forward.1} parent=1 // pred_check_branch
      %62 = sbr.rel (0) target = $region33
    $region32: #{resnet_forward.1} parent=1 // pred_region
      _
    $region33: #{resnet_forward.1} parent=1 // pred_fallthru
      _
    // Predicated region
    $region34: #{resnet_forward.1} parent=1 // pred_check
      _
    $region35: #{resnet_forward.1} parent=1 // pred_check_branch
      %64 = sbr.rel (0) target = $region37
    $region36: #{resnet_forward.1} parent=1 // pred_region
      %s66 = ssub.s32 1024, 1024
      %67 = vsyncadd [#allocation7], %s66
      %s68 = sshll.u32 [#allocation8], 4
      %s69 = int_to_ptr.vmem [resolvable:$true] %s68
      %74 = dma.hbm_to_vmem [thread:$0]  %s8, 1024, %s69, [#allocation7], 64, 64, 4
    $region37: #{resnet_forward.1} parent=1 // pred_fallthru
      _
    // Predicated region
    $region38: #{resnet_forward.1} parent=1 // pred_check
      _
    $region39: #{resnet_forward.1} parent=1 // pred_check_branch
      %76 = sbr.rel (0) target = $region41
    $region40: #{resnet_forward.1} parent=1 // pred_region
      _
    $region41: #{resnet_forward.1} parent=1 // pred_fallthru
      _
    // Predicated region
    $region42: #{resnet_forward.1} parent=1 // pred_check
      _
    $region43: #{resnet_forward.1} parent=1 // pred_check_branch
      %78 = sbr.rel (0) target = $region45
    $region44: #{resnet_forward.1} parent=1 // pred_region
      %s80 = ssub.s32 1024, 1024
      %81 = vsyncadd [#allocation10], %s80
      %s82 = sshll.u32 [#allocation9], 4
      %s83 = int_to_ptr.vmem [resolvable:$true] %s82
      %88 = dma.hbm_to_vmem [thread:$0]  %s10, 1024, %s83, [#allocation10], 64, 64, 4
    $region45: #{resnet_forward.1} parent=1 // pred_fallthru
      _
    // Predicated region
    $region46: #{resnet_forward.1} parent=1 // pred_check
      _
    $region47: #{resnet_forward.1} parent=1 // pred_check_branch
      %90 = sbr.rel (0) target = $region49
    $region48: #{resnet_forward.1} parent=1 // pred_region
      _
    $region49: #{resnet_forward.1} parent=1 // pred_fallthru
      _
    // Predicated region
    $region50: #{resnet_forward.1} parent=1 // pred_check
      _
    $region51: #{resnet_forward.1} parent=1 // pred_check_branch
      %92 = sbr.rel (0) target = $region53
    $region52: #{resnet_forward.1} parent=1 // pred_region
      %s94 = ssub.s32 1024, 1024
      %95 = vsyncadd [#allocation10], %s94
      %s96 = sshll.u32 [#allocation11], 4
      %s97 = int_to_ptr.vmem [resolvable:$true] %s96
      %102 = dma.hbm_to_vmem [thread:$0]  %s12, 1024, %s97, [#allocation10], 64, 64, 4
    $region53: #{resnet_forward.1} parent=1 // pred_fallthru
      _
    // Predicated region
    $region54: #{resnet_forward.1} parent=1 // pred_check
      _
    $region55: #{resnet_forward.1} parent=1 // pred_check_branch
      %104 = sbr.rel (0) target = $region57
    $region56: #{resnet_forward.1} parent=1 // pred_region
      _
    $region57: #{resnet_forward.1} parent=1 // pred_fallthru
      _
    // Predicated region
    $region58: #{resnet_forward.1} parent=1 // pred_check
      _
    $region59: #{resnet_forward.1} parent=1 // pred_check_branch
      %106 = sbr.rel (0) target = $region61
    $region60: #{resnet_forward.1} parent=1 // pred_region
      _
    $region61: #{resnet_forward.1} parent=1 // pred_fallthru
      _
    // Predicated region
    $region62: #{resnet_forward.1} parent=1 // pred_check
      _
    $region63: #{resnet_forward.1} parent=1 // pred_check_branch
      %108 = sbr.rel (0) target = $region65
    $region64: #{resnet_forward.1} parent=1 // pred_region
      _
    $region65: #{resnet_forward.1} parent=1 // pred_fallthru
      _
    // Predicated region
    $region66: #{resnet_forward.1} parent=1 // pred_check
      _
    $region67: #{resnet_forward.1} parent=1 // pred_check_branch
      %110 = sbr.rel (0) target = $region69
    $region68: #{resnet_forward.1} parent=1 // pred_region
      %111 = dma.done [#allocation4], 1024
    $region69: #{resnet_forward.1} parent=1 // pred_fallthru
      _
    // Predicated region
    $region70: #{resnet_forward.1} parent=1 // pred_check
      _
    $region71: #{resnet_forward.1} parent=1 // pred_check_branch
      %113 = sbr.rel (0) target = $region73
    $region72: #{resnet_forward.1} parent=1 // pred_region
      %114 = dma.done [#allocation7], 1024
    $region73: #{resnet_forward.1} parent=1 // pred_fallthru
      _
    // Predicated region
    $region74: #{resnet_forward.1} parent=1 // pred_check
      _
    $region75: #{resnet_forward.1} parent=1 // pred_check_branch
      %116 = sbr.rel (0) target = $region77
    $region76: #{resnet_forward.1} parent=1 // pred_region
      %117 = dma.done [#allocation7], 1024
    $region77: #{resnet_forward.1} parent=1 // pred_fallthru
      _
    // Predicated region
    $region78: #{resnet_forward.1} parent=1 // pred_check
      _
    $region79: #{resnet_forward.1} parent=1 // pred_check_branch
      %119 = sbr.rel (0) target = $region81
    $region80: #{resnet_forward.1} parent=1 // pred_region
      %120 = dma.done [#allocation10], 1024
    $region81: #{resnet_forward.1} parent=1 // pred_fallthru
      _
    // Predicated region
    $region82: #{resnet_forward.1} parent=1 // pred_check
      _
    $region83: #{resnet_forward.1} parent=1 // pred_check_branch
      %122 = sbr.rel (0) target = $region85
    $region84: #{resnet_forward.1} parent=1 // pred_region
      %123 = dma.done [#allocation10], 1024
    $region85: #{resnet_forward.1} parent=1 // pred_fallthru
      _
    %v125 = vld [vmem:[%s0] sm:$0xff]
    %v126 = vmul.f32 %v125, 2.0
    %v127 = vsub.f32 %v126, 1.0
    %v128 = vld [vmem:[%s3] sm:$0x1]
    %v130 = vlaneseq
    %v131 = vshrl.u32 %v130, 7
    %v132 = vsub.s32 0, %v131
    %v133 = vrot.slane %v128, %v132
    %v135 = vld [vmem:[%s2] sm:$0x1]
    %137 = vset.pattern.permute.xlu0 0
    %138 = vperm.xlu0 %137, %v127
    %v139 = vpop.permute.xlu0 %138
    %v141 = vlaneseq
    %v142 = vshrl.u32 %v141, 7
    %v143 = vsub.s32 0, %v142
    %v144 = vrot.slane %v135, %v143
    %v145 = vmul.f32 %v139, %v144
    %v146 = vadd.f32 %v133, %v145
    %v147 = vld [vmem:[%s2 + $0x1] sm:$0x1]
    %148 = vset.pattern.permute.xlu0 1
    %149 = vperm.xlu0 %148, %v127
    %v150 = vpop.permute.xlu0 %149
    %v152 = vlaneseq
    %v153 = vshrl.u32 %v152, 7
    %v154 = vsub.s32 0, %v153
    %v155 = vrot.slane %v147, %v154
    %v156 = vmul.f32 %v150, %v155
    %v157 = vadd.f32 %v146, %v156
    %v158 = vmax.f32 %v157, 0.0
    %v159 = vpack.c.bf16 %v158, %v158
    %v160 = vld [vmem:[#allocation3] sm:$0xf]
    %v161 = vld [vmem:[#allocation3 + $0x4] sm:$0xf]
    %v162 = vld [vmem:[#allocation3 + $0x8] sm:$0xf]
    %v163 = vld [vmem:[#allocation3 + $0xc] sm:$0xf]
    %v164 = vld [vmem:[#allocation3 + $0x10] sm:$0xf]
    %v165 = vld [vmem:[#allocation3 + $0x14] sm:$0xf]
    %v166 = vld [vmem:[#allocation3 + $0x18] sm:$0xf]
    %v167 = vld [vmem:[#allocation3 + $0x1c] sm:$0xf]
    %v168 = vld [vmem:[#allocation3 + $0x20] sm:$0xf]
    %v169 = vld [vmem:[#allocation3 + $0x24] sm:$0xf]
    %v170 = vld [vmem:[#allocation3 + $0x28] sm:$0xf]
    %v171 = vld [vmem:[#allocation3 + $0x2c] sm:$0xf]
    %v172 = vld [vmem:[#allocation3 + $0x30] sm:$0xf]
    %v173 = vld [vmem:[#allocation3 + $0x34] sm:$0xf]
    %v174 = vld [vmem:[#allocation3 + $0x38] sm:$0xf]
    %v175 = vld [vmem:[#allocation3 + $0x3c] sm:$0xf]
    %v176 = vld [vmem:[%s5] sm:$0x1]
    %v178 = vlaneseq
    %v179 = vshrl.u32 %v178, 7
    %v180 = vsub.s32 0, %v179
    %v181 = vrot.slane %v176, %v180
    %v199 = vunpack.c.l.b16 %v160
    %v200 = vunpack.c.l.b16 %v161
    %v201 = vunpack.c.l.b16 %v162
    %v202 = vunpack.c.l.b16 %v163
    %v203 = vunpack.c.l.b16 %v164
    %v204 = vunpack.c.l.b16 %v165
    %v205 = vunpack.c.l.b16 %v166
    %v206 = vunpack.c.l.b16 %v167
    %v207 = vunpack.c.l.b16 %v168
    %v208 = vunpack.c.l.b16 %v169
    %v209 = vunpack.c.l.b16 %v170
    %v210 = vunpack.c.l.b16 %v171
    %v211 = vunpack.c.l.b16 %v172
    %v212 = vunpack.c.l.b16 %v173
    %v213 = vunpack.c.l.b16 %v174
    %v214 = vunpack.c.l.b16 %v175
    %v215 = vpack.c.b16 %v200, %v199
    %v216 = vpack.c.b16 %v202, %v201
    %v217 = vpack.c.b16 %v204, %v203
    %v218 = vpack.c.b16 %v206, %v205
    %v219 = vpack.c.b16 %v208, %v207
    %v220 = vpack.c.b16 %v210, %v209
    %v221 = vpack.c.b16 %v212, %v211
    %v222 = vpack.c.b16 %v214, %v213
    %231 = vmatprep.subr.bf16.mxu0 0
    %232 = vmatpush1.bf16.msra.mxu0 %v222
    %233 = vmatprep.subr.bf16.mxu0 0
    %234 = vmatpush1.bf16.msra.mxu0 %v221
    %235 = vmatprep.subr.bf16.mxu0 0
    %236 = vmatpush1.bf16.msra.mxu0 %v220
    %237 = vmatprep.subr.bf16.mxu0 0
    %238 = vmatpush1.bf16.msra.mxu0 %v219
    %239 = vmatprep.subr.bf16.mxu0 0
    %240 = vmatpush1.bf16.msra.mxu0 %v218
    %241 = vmatprep.subr.bf16.mxu0 0
    %242 = vmatpush1.bf16.msra.mxu0 %v217
    %243 = vmatprep.subr.bf16.mxu0 0
    %244 = vmatpush1.bf16.msra.mxu0 %v216
    %245 = vmatprep.subr.bf16.mxu0 0
    %246 = vmatpush1.bf16.msra.mxu0 %v215
    %247 = vmatprep.subr.bf16.mxu0 0
    %248 = vmatpush2.bf16.msra.mxu0 0
    %249 = vmatprep.subr.bf16.mxu0 0
    %250 = vmatpush2.bf16.msra.mxu0 0
    %251 = vmatprep.subr.bf16.mxu0 0
    %252 = vmatpush2.bf16.msra.mxu0 0
    %253 = vmatprep.subr.bf16.mxu0 0
    %254 = vmatpush2.bf16.msra.mxu0 0
    %255 = vmatprep.subr.bf16.mxu0 0
    %256 = vmatpush2.bf16.msra.mxu0 0
    %257 = vmatprep.subr.bf16.mxu0 0
    %258 = vmatpush2.bf16.msra.mxu0 0
    %259 = vmatprep.subr.bf16.mxu0 0
    %260 = vmatpush2.bf16.msra.mxu0 0
    %261 = vmatprep.subr.bf16.mxu0 0
    %262 = vmatpush2.bf16.msra.mxu0 0
    %263 = vmatprep.mubr.bf16.mxu0 0
    %264 = vmatmul.mubr.bf16.gmra.mxu0 %v159
    %v265 = vpop.f32.mrf.mxu0
    %v266 = vadd.f32 %v181, %v265
    %v267 = vpop.f32.mrf.mxu0
    %v268 = vpop.f32.mrf.mxu0
    %v269 = vpop.f32.mrf.mxu0
    %270 = vdwg.mxu0
    %v271 = vmax.f32 %v266, 0.0
    %v272 = vld [vmem:[%s1] sm:$0x1]
    %v273 = vlaneseq
    %v274 = vshrl.u32 %v273, 7
    %v275 = vsub.s32 0, %v274
    %v276 = vrot.slane %v272, %v275
    %v277 = vmul.f32 %v139, %v276
    %v278 = vadd.f32 %v271, %v277
    %v279 = vld [vmem:[%s1 + $0x1] sm:$0x1]
    %v280 = vlaneseq
    %v281 = vshrl.u32 %v280, 7
    %v282 = vsub.s32 0, %v281
    %v283 = vrot.slane %v279, %v282
    %v284 = vmul.f32 %v150, %v283
    %v285 = vadd.f32 %v278, %v284
    %v286 = vpack.c.bf16 %v285, %v285
    %v287 = vld [vmem:[#allocation6] sm:$0xf]
    %v288 = vld [vmem:[#allocation6 + $0x4] sm:$0xf]
    %v289 = vld [vmem:[#allocation6 + $0x8] sm:$0xf]
    %v290 = vld [vmem:[#allocation6 + $0xc] sm:$0xf]
    %v291 = vld [vmem:[#allocation6 + $0x10] sm:$0xf]
    %v292 = vld [vmem:[#allocation6 + $0x14] sm:$0xf]
    %v293 = vld [vmem:[#allocation6 + $0x18] sm:$0xf]
    %v294 = vld [vmem:[#allocation6 + $0x1c] sm:$0xf]
    %v295 = vld [vmem:[#allocation6 + $0x20] sm:$0xf]
    %v296 = vld [vmem:[#allocation6 + $0x24] sm:$0xf]
    %v297 = vld [vmem:[#allocation6 + $0x28] sm:$0xf]
    %v298 = vld [vmem:[#allocation6 + $0x2c] sm:$0xf]
    %v299 = vld [vmem:[#allocation6 + $0x30] sm:$0xf]
    %v300 = vld [vmem:[#allocation6 + $0x34] sm:$0xf]
    %v301 = vld [vmem:[#allocation6 + $0x38] sm:$0xf]
    %v302 = vld [vmem:[#allocation6 + $0x3c] sm:$0xf]
    %v303 = vld [vmem:[%s7] sm:$0x1]
    %v305 = vlaneseq
    %v306 = vshrl.u32 %v305, 7
    %v307 = vsub.s32 0, %v306
    %v308 = vrot.slane %v303, %v307
    %v326 = vunpack.c.l.b16 %v287
    %v327 = vunpack.c.l.b16 %v288
    %v328 = vunpack.c.l.b16 %v289
    %v329 = vunpack.c.l.b16 %v290
    %v330 = vunpack.c.l.b16 %v291
    %v331 = vunpack.c.l.b16 %v292
    %v332 = vunpack.c.l.b16 %v293
    %v333 = vunpack.c.l.b16 %v294
    %v334 = vunpack.c.l.b16 %v295
    %v335 = vunpack.c.l.b16 %v296
    %v336 = vunpack.c.l.b16 %v297
    %v337 = vunpack.c.l.b16 %v298
    %v338 = vunpack.c.l.b16 %v299
    %v339 = vunpack.c.l.b16 %v300
    %v340 = vunpack.c.l.b16 %v301
    %v341 = vunpack.c.l.b16 %v302
    %v342 = vpack.c.b16 %v327, %v326
    %v343 = vpack.c.b16 %v329, %v328
    %v344 = vpack.c.b16 %v331, %v330
    %v345 = vpack.c.b16 %v333, %v332
    %v346 = vpack.c.b16 %v335, %v334
    %v347 = vpack.c.b16 %v337, %v336
    %v348 = vpack.c.b16 %v339, %v338
    %v349 = vpack.c.b16 %v341, %v340
    %358 = vmatprep.subr.bf16.mxu0 0
    %359 = vmatpush1.bf16.msra.mxu0 %v349
    %360 = vmatprep.subr.bf16.mxu0 0
    %361 = vmatpush1.bf16.msra.mxu0 %v348
    %362 = vmatprep.subr.bf16.mxu0 0
    %363 = vmatpush1.bf16.msra.mxu0 %v347
    %364 = vmatprep.subr.bf16.mxu0 0
    %365 = vmatpush1.bf16.msra.mxu0 %v346
    %366 = vmatprep.subr.bf16.mxu0 0
    %367 = vmatpush1.bf16.msra.mxu0 %v345
    %368 = vmatprep.subr.bf16.mxu0 0
    %369 = vmatpush1.bf16.msra.mxu0 %v344
    %370 = vmatprep.subr.bf16.mxu0 0
    %371 = vmatpush1.bf16.msra.mxu0 %v343
    %372 = vmatprep.subr.bf16.mxu0 0
    %373 = vmatpush1.bf16.msra.mxu0 %v342
    %374 = vmatprep.subr.bf16.mxu0 0
    %375 = vmatpush2.bf16.msra.mxu0 0
    %376 = vmatprep.subr.bf16.mxu0 0
    %377 = vmatpush2.bf16.msra.mxu0 0
    %378 = vmatprep.subr.bf16.mxu0 0
    %379 = vmatpush2.bf16.msra.mxu0 0
    %380 = vmatprep.subr.bf16.mxu0 0
    %381 = vmatpush2.bf16.msra.mxu0 0
    %382 = vmatprep.subr.bf16.mxu0 0
    %383 = vmatpush2.bf16.msra.mxu0 0
    %384 = vmatprep.subr.bf16.mxu0 0
    %385 = vmatpush2.bf16.msra.mxu0 0
    %386 = vmatprep.subr.bf16.mxu0 0
    %387 = vmatpush2.bf16.msra.mxu0 0
    %388 = vmatprep.subr.bf16.mxu0 0
    %389 = vmatpush2.bf16.msra.mxu0 0
    %390 = vmatprep.mubr.bf16.mxu0 0
    %391 = vmatmul.mubr.bf16.gmra.mxu0 %v286
    %v392 = vpop.f32.mrf.mxu0
    %v393 = vadd.f32 %v308, %v392
    %v394 = vpop.f32.mrf.mxu0
    %v395 = vpop.f32.mrf.mxu0
    %v396 = vpop.f32.mrf.mxu0
    %397 = vdwg.mxu0
    %v398 = vmax.f32 %v393, 0.0
    %v399 = vpack.c.bf16 %v398, %v398
    %v400 = vld [vmem:[#allocation8] sm:$0xf]
    %v401 = vld [vmem:[#allocation8 + $0x4] sm:$0xf]
    %v402 = vld [vmem:[#allocation8 + $0x8] sm:$0xf]
    %v403 = vld [vmem:[#allocation8 + $0xc] sm:$0xf]
    %v404 = vld [vmem:[#allocation8 + $0x10] sm:$0xf]
    %v405 = vld [vmem:[#allocation8 + $0x14] sm:$0xf]
    %v406 = vld [vmem:[#allocation8 + $0x18] sm:$0xf]
    %v407 = vld [vmem:[#allocation8 + $0x1c] sm:$0xf]
    %v408 = vld [vmem:[#allocation8 + $0x20] sm:$0xf]
    %v409 = vld [vmem:[#allocation8 + $0x24] sm:$0xf]
    %v410 = vld [vmem:[#allocation8 + $0x28] sm:$0xf]
    %v411 = vld [vmem:[#allocation8 + $0x2c] sm:$0xf]
    %v412 = vld [vmem:[#allocation8 + $0x30] sm:$0xf]
    %v413 = vld [vmem:[#allocation8 + $0x34] sm:$0xf]
    %v414 = vld [vmem:[#allocation8 + $0x38] sm:$0xf]
    %v415 = vld [vmem:[#allocation8 + $0x3c] sm:$0xf]
    %v416 = vld [vmem:[%s9] sm:$0x1]
    %v418 = vlaneseq
    %v419 = vshrl.u32 %v418, 7
    %v420 = vsub.s32 0, %v419
    %v421 = vrot.slane %v416, %v420
    %v439 = vunpack.c.l.b16 %v400
    %v440 = vunpack.c.l.b16 %v401
    %v441 = vunpack.c.l.b16 %v402
    %v442 = vunpack.c.l.b16 %v403
    %v443 = vunpack.c.l.b16 %v404
    %v444 = vunpack.c.l.b16 %v405
    %v445 = vunpack.c.l.b16 %v406
    %v446 = vunpack.c.l.b16 %v407
    %v447 = vunpack.c.l.b16 %v408
    %v448 = vunpack.c.l.b16 %v409
    %v449 = vunpack.c.l.b16 %v410
    %v450 = vunpack.c.l.b16 %v411
    %v451 = vunpack.c.l.b16 %v412
    %v452 = vunpack.c.l.b16 %v413
    %v453 = vunpack.c.l.b16 %v414
    %v454 = vunpack.c.l.b16 %v415
    %v455 = vpack.c.b16 %v440, %v439
    %v456 = vpack.c.b16 %v442, %v441
    %v457 = vpack.c.b16 %v444, %v443
    %v458 = vpack.c.b16 %v446, %v445
    %v459 = vpack.c.b16 %v448, %v447
    %v460 = vpack.c.b16 %v450, %v449
    %v461 = vpack.c.b16 %v452, %v451
    %v462 = vpack.c.b16 %v454, %v453
    %471 = vmatprep.subr.bf16.mxu0 0
    %472 = vmatpush1.bf16.msra.mxu0 %v462
    %473 = vmatprep.subr.bf16.mxu0 0
    %474 = vmatpush1.bf16.msra.mxu0 %v461
    %475 = vmatprep.subr.bf16.mxu0 0
    %476 = vmatpush1.bf16.msra.mxu0 %v460
    %477 = vmatprep.subr.bf16.mxu0 0
    %478 = vmatpush1.bf16.msra.mxu0 %v459
    %479 = vmatprep.subr.bf16.mxu0 0
    %480 = vmatpush1.bf16.msra.mxu0 %v458
    %481 = vmatprep.subr.bf16.mxu0 0
    %482 = vmatpush1.bf16.msra.mxu0 %v457
    %483 = vmatprep.subr.bf16.mxu0 0
    %484 = vmatpush1.bf16.msra.mxu0 %v456
    %485 = vmatprep.subr.bf16.mxu0 0
    %486 = vmatpush1.bf16.msra.mxu0 %v455
    %487 = vmatprep.subr.bf16.mxu0 0
    %488 = vmatpush2.bf16.msra.mxu0 0
    %489 = vmatprep.subr.bf16.mxu0 0
    %490 = vmatpush2.bf16.msra.mxu0 0
    %491 = vmatprep.subr.bf16.mxu0 0
    %492 = vmatpush2.bf16.msra.mxu0 0
    %493 = vmatprep.subr.bf16.mxu0 0
    %494 = vmatpush2.bf16.msra.mxu0 0
    %495 = vmatprep.subr.bf16.mxu0 0
    %496 = vmatpush2.bf16.msra.mxu0 0
    %497 = vmatprep.subr.bf16.mxu0 0
    %498 = vmatpush2.bf16.msra.mxu0 0
    %499 = vmatprep.subr.bf16.mxu0 0
    %500 = vmatpush2.bf16.msra.mxu0 0
    %501 = vmatprep.subr.bf16.mxu0 0
    %502 = vmatpush2.bf16.msra.mxu0 0
    %503 = vmatprep.mubr.bf16.mxu0 0
    %504 = vmatmul.mubr.bf16.gmra.mxu0 %v399
    %v505 = vpop.f32.mrf.mxu0
    %v506 = vadd.f32 %v421, %v505
    %v507 = vpop.f32.mrf.mxu0
    %v508 = vpop.f32.mrf.mxu0
    %v509 = vpop.f32.mrf.mxu0
    %510 = vdwg.mxu0
    %v511 = vmax.f32 %v506, 0.0
    %v512 = vadd.f32 %v511, %v285
    %v513 = vpack.c.bf16 %v512, %v512
    %v514 = vld [vmem:[#allocation9] sm:$0xf]
    %v515 = vld [vmem:[#allocation9 + $0x4] sm:$0xf]
    %v516 = vld [vmem:[#allocation9 + $0x8] sm:$0xf]
    %v517 = vld [vmem:[#allocation9 + $0xc] sm:$0xf]
    %v518 = vld [vmem:[#allocation9 + $0x10] sm:$0xf]
    %v519 = vld [vmem:[#allocation9 + $0x14] sm:$0xf]
    %v520 = vld [vmem:[#allocation9 + $0x18] sm:$0xf]
    %v521 = vld [vmem:[#allocation9 + $0x1c] sm:$0xf]
    %v522 = vld [vmem:[#allocation9 + $0x20] sm:$0xf]
    %v523 = vld [vmem:[#allocation9 + $0x24] sm:$0xf]
    %v524 = vld [vmem:[#allocation9 + $0x28] sm:$0xf]
    %v525 = vld [vmem:[#allocation9 + $0x2c] sm:$0xf]
    %v526 = vld [vmem:[#allocation9 + $0x30] sm:$0xf]
    %v527 = vld [vmem:[#allocation9 + $0x34] sm:$0xf]
    %v528 = vld [vmem:[#allocation9 + $0x38] sm:$0xf]
    %v529 = vld [vmem:[#allocation9 + $0x3c] sm:$0xf]
    %v530 = vld [vmem:[%s11] sm:$0x1]
    %v532 = vlaneseq
    %v533 = vshrl.u32 %v532, 7
    %v534 = vsub.s32 0, %v533
    %v535 = vrot.slane %v530, %v534
    %v553 = vunpack.c.l.b16 %v514
    %v554 = vunpack.c.l.b16 %v515
    %v555 = vunpack.c.l.b16 %v516
    %v556 = vunpack.c.l.b16 %v517
    %v557 = vunpack.c.l.b16 %v518
    %v558 = vunpack.c.l.b16 %v519
    %v559 = vunpack.c.l.b16 %v520
    %v560 = vunpack.c.l.b16 %v521
    %v561 = vunpack.c.l.b16 %v522
    %v562 = vunpack.c.l.b16 %v523
    %v563 = vunpack.c.l.b16 %v524
    %v564 = vunpack.c.l.b16 %v525
    %v565 = vunpack.c.l.b16 %v526
    %v566 = vunpack.c.l.b16 %v527
    %v567 = vunpack.c.l.b16 %v528
    %v568 = vunpack.c.l.b16 %v529
    %v569 = vpack.c.b16 %v554, %v553
    %v570 = vpack.c.b16 %v556, %v555
    %v571 = vpack.c.b16 %v558, %v557
    %v572 = vpack.c.b16 %v560, %v559
    %v573 = vpack.c.b16 %v562, %v561
    %v574 = vpack.c.b16 %v564, %v563
    %v575 = vpack.c.b16 %v566, %v565
    %v576 = vpack.c.b16 %v568, %v567
    %585 = vmatprep.subr.bf16.mxu0 0
    %586 = vmatpush1.bf16.msra.mxu0 %v576
    %587 = vmatprep.subr.bf16.mxu0 0
    %588 = vmatpush1.bf16.msra.mxu0 %v575
    %589 = vmatprep.subr.bf16.mxu0 0
    %590 = vmatpush1.bf16.msra.mxu0 %v574
    %591 = vmatprep.subr.bf16.mxu0 0
    %592 = vmatpush1.bf16.msra.mxu0 %v573
    %593 = vmatprep.subr.bf16.mxu0 0
    %594 = vmatpush1.bf16.msra.mxu0 %v572
    %595 = vmatprep.subr.bf16.mxu0 0
    %596 = vmatpush1.bf16.msra.mxu0 %v571
    %597 = vmatprep.subr.bf16.mxu0 0
    %598 = vmatpush1.bf16.msra.mxu0 %v570
    %599 = vmatprep.subr.bf16.mxu0 0
    %600 = vmatpush1.bf16.msra.mxu0 %v569
    %601 = vmatprep.subr.bf16.mxu0 0
    %602 = vmatpush2.bf16.msra.mxu0 0
    %603 = vmatprep.subr.bf16.mxu0 0
    %604 = vmatpush2.bf16.msra.mxu0 0
    %605 = vmatprep.subr.bf16.mxu0 0
    %606 = vmatpush2.bf16.msra.mxu0 0
    %607 = vmatprep.subr.bf16.mxu0 0
    %608 = vmatpush2.bf16.msra.mxu0 0
    %609 = vmatprep.subr.bf16.mxu0 0
    %610 = vmatpush2.bf16.msra.mxu0 0
    %611 = vmatprep.subr.bf16.mxu0 0
    %612 = vmatpush2.bf16.msra.mxu0 0
    %613 = vmatprep.subr.bf16.mxu0 0
    %614 = vmatpush2.bf16.msra.mxu0 0
    %615 = vmatprep.subr.bf16.mxu0 0
    %616 = vmatpush2.bf16.msra.mxu0 0
    %617 = vmatprep.mubr.bf16.mxu0 0
    %618 = vmatmul.mubr.bf16.gmra.mxu0 %v513
    %v619 = vpop.f32.mrf.mxu0
    %v620 = vadd.f32 %v535, %v619
    %v621 = vpop.f32.mrf.mxu0
    %v622 = vpop.f32.mrf.mxu0
    %v623 = vpop.f32.mrf.mxu0
    %624 = vdwg.mxu0
    %v625 = vmax.f32 %v620, 0.0
    %v626 = vpack.c.bf16 %v625, %v625
    %v627 = vld [vmem:[#allocation11] sm:$0xf]
    %v628 = vld [vmem:[#allocation11 + $0x4] sm:$0xf]
    %v629 = vld [vmem:[#allocation11 + $0x8] sm:$0xf]
    %v630 = vld [vmem:[#allocation11 + $0xc] sm:$0xf]
    %v631 = vld [vmem:[#allocation11 + $0x10] sm:$0xf]
    %v632 = vld [vmem:[#allocation11 + $0x14] sm:$0xf]
    %v633 = vld [vmem:[#allocation11 + $0x18] sm:$0xf]
    %v634 = vld [vmem:[#allocation11 + $0x1c] sm:$0xf]
    %v635 = vld [vmem:[#allocation11 + $0x20] sm:$0xf]
    %v636 = vld [vmem:[#allocation11 + $0x24] sm:$0xf]
    %v637 = vld [vmem:[#allocation11 + $0x28] sm:$0xf]
    %v638 = vld [vmem:[#allocation11 + $0x2c] sm:$0xf]
    %v639 = vld [vmem:[#allocation11 + $0x30] sm:$0xf]
    %v640 = vld [vmem:[#allocation11 + $0x34] sm:$0xf]
    %v641 = vld [vmem:[#allocation11 + $0x38] sm:$0xf]
    %v642 = vld [vmem:[#allocation11 + $0x3c] sm:$0xf]
    %v643 = vld [vmem:[%s13] sm:$0x1]
    %v645 = vlaneseq
    %v646 = vshrl.u32 %v645, 7
    %v647 = vsub.s32 0, %v646
    %v648 = vrot.slane %v643, %v647
    %v666 = vunpack.c.l.b16 %v627
    %v667 = vunpack.c.l.b16 %v628
    %v668 = vunpack.c.l.b16 %v629
    %v669 = vunpack.c.l.b16 %v630
    %v670 = vunpack.c.l.b16 %v631
    %v671 = vunpack.c.l.b16 %v632
    %v672 = vunpack.c.l.b16 %v633
    %v673 = vunpack.c.l.b16 %v634
    %v674 = vunpack.c.l.b16 %v635
    %v675 = vunpack.c.l.b16 %v636
    %v676 = vunpack.c.l.b16 %v637
    %v677 = vunpack.c.l.b16 %v638
    %v678 = vunpack.c.l.b16 %v639
    %v679 = vunpack.c.l.b16 %v640
    %v680 = vunpack.c.l.b16 %v641
    %v681 = vunpack.c.l.b16 %v642
    %v682 = vpack.c.b16 %v667, %v666
    %v683 = vpack.c.b16 %v669, %v668
    %v684 = vpack.c.b16 %v671, %v670
    %v685 = vpack.c.b16 %v673, %v672
    %v686 = vpack.c.b16 %v675, %v674
    %v687 = vpack.c.b16 %v677, %v676
    %v688 = vpack.c.b16 %v679, %v678
    %v689 = vpack.c.b16 %v681, %v680
    %698 = vmatprep.subr.bf16.mxu0 0
    %699 = vmatpush1.bf16.msra.mxu0 %v689
    %700 = vmatprep.subr.bf16.mxu0 0
    %701 = vmatpush1.bf16.msra.mxu0 %v688
    %702 = vmatprep.subr.bf16.mxu0 0
    %703 = vmatpush1.bf16.msra.mxu0 %v687
    %704 = vmatprep.subr.bf16.mxu0 0
    %705 = vmatpush1.bf16.msra.mxu0 %v686
    %706 = vmatprep.subr.bf16.mxu0 0
    %707 = vmatpush1.bf16.msra.mxu0 %v685
    %708 = vmatprep.subr.bf16.mxu0 0
    %709 = vmatpush1.bf16.msra.mxu0 %v684
    %710 = vmatprep.subr.bf16.mxu0 0
    %711 = vmatpush1.bf16.msra.mxu0 %v683
    %712 = vmatprep.subr.bf16.mxu0 0
    %713 = vmatpush1.bf16.msra.mxu0 %v682
    %714 = vmatprep.subr.bf16.mxu0 0
    %715 = vmatpush2.bf16.msra.mxu0 0
    %716 = vmatprep.subr.bf16.mxu0 0
    %717 = vmatpush2.bf16.msra.mxu0 0
    %718 = vmatprep.subr.bf16.mxu0 0
    %719 = vmatpush2.bf16.msra.mxu0 0
    %720 = vmatprep.subr.bf16.mxu0 0
    %721 = vmatpush2.bf16.msra.mxu0 0
    %722 = vmatprep.subr.bf16.mxu0 0
    %723 = vmatpush2.bf16.msra.mxu0 0
    %724 = vmatprep.subr.bf16.mxu0 0
    %725 = vmatpush2.bf16.msra.mxu0 0
    %726 = vmatprep.subr.bf16.mxu0 0
    %727 = vmatpush2.bf16.msra.mxu0 0
    %728 = vmatprep.subr.bf16.mxu0 0
    %729 = vmatpush2.bf16.msra.mxu0 0
    %730 = vmatprep.mubr.bf16.mxu0 0
    %731 = vmatmul.mubr.bf16.gmra.mxu0 %v626
    %v732 = vpop.f32.mrf.mxu0
    %v733 = vadd.f32 %v648, %v732
    %v734 = vpop.f32.mrf.mxu0
    %v735 = vpop.f32.mrf.mxu0
    %v736 = vpop.f32.mrf.mxu0
    %737 = vdwg.mxu0
    %v738 = vmax.f32 %v733, 0.0
    %v739 = vadd.f32 %v738, %v512
    %v740 = vld [vmem:[%s14] sm:$0x1]
    %v741 = vpack.c.bf16 %v739, %v739
    %v742 = vld [vmem:[#allocation2] sm:$0x1]
    %744 = vset.pattern.permute.xlu0 0
    %745 = vperm.xlu0 %744, %v742
    %v746 = vpop.permute.xlu0 %745
    %v748 = vlaneseq
    %v749 = vshrl.u32 %v748, 7
    %v750 = vsub.s32 0, %v749
    %v751 = vrot.slane %v746, %v750
    %752 = vmatprep.subr.bf16.mxu0 0
    %753 = vmatpush1.bf16.xpose.msra.mxu0 0
    %754 = vmatprep.subr.bf16.mxu0 0
    %755 = vmatpush1.bf16.xpose.msra.mxu0 0
    %756 = vmatprep.subr.bf16.mxu0 0
    %757 = vmatpush1.bf16.xpose.msra.mxu0 0
    %758 = vmatprep.subr.bf16.mxu0 0
    %759 = vmatpush1.bf16.xpose.msra.mxu0 0
    %760 = vmatprep.subr.bf16.mxu0 0
    %761 = vmatpush1.bf16.xpose.msra.mxu0 0
    %762 = vmatprep.subr.bf16.mxu0 0
    %763 = vmatpush1.bf16.xpose.msra.mxu0 0
    %764 = vmatprep.subr.bf16.mxu0 0
    %765 = vmatpush1.bf16.xpose.msra.mxu0 0
    %766 = vmatprep.subr.bf16.mxu0 0
    %767 = vmatpush1.bf16.xpose.msra.mxu0 %v741
    %768 = vmatprep.subr.bf16.mxu0 0
    %769 = vmatpush2.bf16.xpose.msra.mxu0 0
    %770 = vmatprep.subr.bf16.mxu0 0
    %771 = vmatpush2.bf16.xpose.msra.mxu0 0
    %772 = vmatprep.subr.bf16.mxu0 0
    %773 = vmatpush2.bf16.xpose.msra.mxu0 0
    %774 = vmatprep.subr.bf16.mxu0 0
    %775 = vmatpush2.bf16.xpose.msra.mxu0 0
    %776 = vmatprep.subr.bf16.mxu0 0
    %777 = vmatpush2.bf16.xpose.msra.mxu0 0
    %778 = vmatprep.subr.bf16.mxu0 0
    %779 = vmatpush2.bf16.xpose.msra.mxu0 0
    %780 = vmatprep.subr.bf16.mxu0 0
    %781 = vmatpush2.bf16.xpose.msra.mxu0 0
    %782 = vmatprep.subr.bf16.mxu0 0
    %783 = vmatpush2.bf16.xpose.msra.mxu0 0
    %784 = vmatprep.mubr.bf16.mxu0 0
    %785 = vmatmul.mubr.bf16.gmra.mxu0 %v740
    %v786 = vpop.f32.mrf.mxu0
    %v787 = vadd.f32 %v751, %v786
    %v788 = vpop.f32.mrf.mxu0
    %v789 = vpop.f32.mrf.mxu0
    %v790 = vpop.f32.mrf.mxu0
    %791 = vdwg.mxu0
    %vm792 = vcmask 57344
    %793 = vst.msk [vmem:[#allocation12] sm:$0x1] %vm792, %v787
    // Predicated region
    $region86: #{resnet_forward.1} parent=1 // pred_check
      _
    $region87: #{resnet_forward.1} parent=1 // pred_check_branch
      %795 = sbr.rel (0) target = $region89
    $region88: #{resnet_forward.1} parent=1 // pred_region
      %s797 = ssub.s32 16, 16
      %798 = vsyncadd [#allocation5], %s797
      %s800 = sshll.u32 [#allocation12], 4
      %s801 = int_to_ptr.vmem [resolvable:$true] %s800
      %803 = dma.vmem_to_hbm [thread:$0]  %s801, 16, %s16, [#allocation5]
    $region89: #{resnet_forward.1} parent=1 // pred_fallthru
      _
    // Predicated region
    $region90: #{resnet_forward.1} parent=1 // pred_check
      _
    $region91: #{resnet_forward.1} parent=1 // pred_check_branch
      %805 = sbr.rel (0) target = $region93
    $region92: #{resnet_forward.1} parent=1 // pred_region
      %806 = dma.done [#allocation5], 16
    $region93: #{resnet_forward.1} parent=1 // pred_fallthru
      _
    %807 = vsyncpa [#allocation4], 1
    %808 = vsyncpa [#allocation7], 1
    %809 = vsyncpa [#allocation10], 1
    %810 = vsyncpa [#allocation5], 1

</llo_original>
